<compile_context>
chip_gen: v5e
topology: v5e:2x2
jax: 0.10.0
libtpu: 0.0.40
codegen_flags: <defaults>
</compile_context>

<pallas_src>
import math

import jax
import jax.numpy as jnp
from jax.experimental import pallas as pl
from jax.experimental.pallas import tpu as pltpu


_SQRT_2_OVER_PI = math.sqrt(2.0 / math.pi)


def _gelu_kernel(x_ref, o_ref):
    # Compute in f32 for accuracy (matches PyTorch math), cast on store.
    x = x_ref[...].astype(jnp.float32)
    inner = _SQRT_2_OVER_PI * (x + 0.044715 * (x * x * x))
    o_ref[...] = (0.5 * x * (1.0 + jnp.tanh(inner))).astype(o_ref.dtype)


def _choose_lane_width(n):
    """Largest lane-dense width (multiple of 128) that divides n exactly."""
    for c in (8192, 4096, 2048, 1024, 512, 256, 128):
        if n % c == 0:
            return c
    return None


def gelu_pallas(x):
    """Applies the tanh-approx GELU elementwise to `x` (any shape)."""
    orig_shape = x.shape
    dtype = x.dtype
    n = x.size
    if n == 0:
        return x

    flat = x.reshape(-1)

    padded_n = n
    if n >= 128:
        c = _choose_lane_width(n)
        if c is None:
            # Rare fallback: tail-pad the flat vector to a lane-dense length.
            chunk = 1024 if n >= 1024 else 128
            padded_n = ((n + chunk - 1) // chunk) * chunk
            flat = jnp.pad(flat, (0, padded_n - n))
            c = _choose_lane_width(padded_n)
    else:
        # Tiny input: single full-array block (exempt from (8,128) rule).
        c = n

    r = padded_n // c
    itemsize = jnp.dtype(dtype).itemsize

    # Target ~2 MiB per block: big enough to hit ~85% of HBM roofline,
    # small enough that 2 arrays x 2 pipeline buffers fit every generation's
    # VMEM (incl. v7x's 64 MiB) at default scoped limits.
    target_block_bytes = 2 * 1024 * 1024
    rows_per_block = max(8, (target_block_bytes // (c * itemsize)) // 8 * 8)
    block_rows = r if rows_per_block >= r else rows_per_block

    x2 = flat.reshape(r, c)
    grid = (pl.cdiv(r, block_rows),)

    cost = pl.CostEstimate(
        flops=10 * n,
        transcendentals=n,
        bytes_accessed=2 * n * itemsize,
    )

    out = pl.pallas_call(
        _gelu_kernel,
        out_shape=jax.ShapeDtypeStruct((r, c), dtype),
        grid=grid,
        in_specs=[pl.BlockSpec((block_rows, c), lambda i: (i, 0))],
        out_specs=pl.BlockSpec((block_rows, c), lambda i: (i, 0)),
        compiler_params=pltpu.CompilerParams(
            dimension_semantics=("parallel",),
        ),
        cost_estimate=cost,
    )(x2)

    out_flat = out.reshape(-1)
    if padded_n != n:
        out_flat = out_flat[:n]
    return out_flat.reshape(orig_shape)


def gelu_ref(x):
    return 0.5 * x * (
        1.0 + jnp.tanh(_SQRT_2_OVER_PI * (x + 0.044715 * jnp.power(x, 3.0)))
    )


if __name__ == "__main__":
    key = jax.random.PRNGKey(0)
    # Small transformer-ish activation: (batch=2, seq=8, hidden=32)
    x = jax.random.normal(key, (2, 8, 32), dtype=jnp.float32)

    y = gelu_pallas(x)
    y = jax.block_until_ready(y)

    y_ref = gelu_ref(x)
    assert y.shape == x.shape and y.dtype == x.dtype
    assert jnp.allclose(y, y_ref, atol=1e-5, rtol=1e-5)

    print("KERNEL_OK")
</pallas_src>

<mosaic_0001>
module attributes {stable_mosaic.version = 11 : i64} {
  func.func @_gelu_kernel(%arg0: i32, %arg1: memref<1x512xf32, #tpu.memory_space<vmem>>, %arg2: memref<1x512xf32, #tpu.memory_space<vmem>>) attributes {dimension_semantics = [#tpu.dimension_semantics<parallel>], iteration_bounds = array<i64: 1>, scalar_prefetch = 0 : i64, scratch_operands = 0 : i64, tpu.core_type = #tpu.core_type<tc>, window_params = [{transform_indices = @transform_0, window_bounds = array<i64: 1, 512>}, {transform_indices = @transform_1, window_bounds = array<i64: 1, 512>}]} {
    %c0 = arith.constant 0 : index
    %c0_0 = arith.constant 0 : index
    %0 = vector.load %arg1[%c0, %c0_0] : memref<1x512xf32, #tpu.memory_space<vmem>>, vector<1x512xf32>
    %1 = arith.mulf %0, %0 : vector<1x512xf32>
    %2 = arith.mulf %1, %0 : vector<1x512xf32>
    %cst = arith.constant 4.471500e-02 : f32
    %3 = vector.broadcast %cst : f32 to vector<1x512xf32>
    %4 = arith.mulf %3, %2 : vector<1x512xf32>
    %5 = arith.addf %0, %4 : vector<1x512xf32>
    %cst_1 = arith.constant 0.797884583 : f32
    %6 = vector.broadcast %cst_1 : f32 to vector<1x512xf32>
    %7 = arith.mulf %6, %5 : vector<1x512xf32>
    %cst_2 = arith.constant 5.000000e-01 : f32
    %8 = vector.broadcast %cst_2 : f32 to vector<1x512xf32>
    %9 = arith.mulf %8, %0 : vector<1x512xf32>
    %10 = math.tanh %7 : vector<1x512xf32>
    %cst_3 = arith.constant 1.000000e+00 : f32
    %11 = vector.broadcast %cst_3 : f32 to vector<1x512xf32>
    %12 = arith.addf %11, %10 : vector<1x512xf32>
    %13 = arith.mulf %9, %12 : vector<1x512xf32>
    %c0_4 = arith.constant 0 : index
    %c0_5 = arith.constant 0 : index
    %14 = vector.load %arg2[%c0_4, %c0_5] : memref<1x512xf32, #tpu.memory_space<vmem>>, vector<1x512xf32>
    tpu.vector_store %arg2[%c0_4, %c0_5], %13 {strides = array<i32>} : memref<1x512xf32, #tpu.memory_space<vmem>>, vector<1x512xf32>,
    return
  }
  func.func @transform_0(%arg0: i32) -> (i32, i32) {
    %c0_i32 = arith.constant 0 : i32
    %c0_i32_0 = arith.constant 0 : i32
    return %arg0, %c0_i32 : i32, i32
  }
  func.func @transform_1(%arg0: i32) -> (i32, i32) {
    %c0_i32 = arith.constant 0 : i32
    %c0_i32_0 = arith.constant 0 : i32
    return %arg0, %c0_i32 : i32, i32
  }
}

</mosaic_0001>

<llo_original>
// kernel: tpu_custom_call.1
$region0: #{tpu_custom_call.1}
  #allocation0 [shape = 'u32[]', space=smem, size = 0x4, offset = 0x4, fixed_abs, tag = 'smem constant byte address 0x4 - core index']
  #allocation1 [shape = 'u32[72,128]{1,0:T(1,128)}', space=vmem, size = 0x9000, scoped, tag = 'internal scratch']
  %s0 = inlined_call_operand.hbm [shape: f32[1,512], index: 0, kind: input, shape index: {}]
  %s1 = inlined_call_operand.hbm [shape: f32[1,512], index: 1, kind: output, shape index: {}]
  %s2 = sld [smem:[#allocation0]]
  $region18: #{tpu_custom_call.1} parent=0
    _
  %s4 = ssub.s32 1, %s2
  %s5 = scalar_select 0, %s4, %s2
  $region1: #{tpu_custom_call.1} parent=0
    #allocation2 [shape = 'u8[2048]{0}', space=vmem, size = 0x800, scoped, tag = 'input window, operand 0, single buffered']
    #allocation3 [shape = 's32[1]{0}', space=sflag, size = 0x4, scoped, tag = 'scoped memory for tpu_custom_call.1']
    #allocation4 [shape = 's32[1]{0}', space=sflag, size = 0x4, scoped, tag = 'scoped memory for tpu_custom_call.1']
    #allocation5 [shape = 'u8[2048]{0}', space=vmem, size = 0x800, scoped, tag = 'output window, operand 0, single buffered']
    %6 = vsyncpa [#allocation3], 0
    %7 = vsyncpa [#allocation4], 0
    // Predicated region
    $region2: #{tpu_custom_call.1} parent=1 // pred_check
      _
    $region3: #{tpu_custom_call.1} parent=1 // pred_check_branch
      %9 = sbr.rel (0) target = $region5
    $region4: #{tpu_custom_call.1} parent=1 // pred_region
      %11 = vsyncadd [#allocation3], 0
      %s13 = sshll.u32 %s0, 4
      %s14 = int_to_ptr.hbm [resolvable:$true] %s13
      %s15 = sshll.u32 [#allocation2], 4
      %s16 = int_to_ptr.vmem [resolvable:$true] %s15
      %18 = dma.hbm_to_vmem [thread:$0]  %s14, 64, %s16, [#allocation3]
    $region5: #{tpu_custom_call.1} parent=1 // pred_fallthru
      _
    // Predicated region
    $region6: #{tpu_custom_call.1} parent=1 // pred_check
      _
    $region7: #{tpu_custom_call.1} parent=1 // pred_check_branch
      %20 = sbr.rel (0) target = $region9
    $region8: #{tpu_custom_call.1} parent=1 // pred_region
      %22 = dma.done [#allocation3], 64
    $region9: #{tpu_custom_call.1} parent=1 // pred_fallthru
      _
    %v23 = vld [vmem:[#allocation2] sm:$0xf]
    %v24 = vmul.f32 %v23, %v23
    %v25 = vmul.f32 %v24, %v23
    %v26 = vmul.f32 %v25, 0.044715
    %v27 = vadd.f32 %v23, %v26
    %v28 = vmul.f32 %v27, 0.7978846
    %v29 = vmul.f32 %v23, 0.5
    %v30 = vtanh.pop %v28
    %v31 = vadd.f32 %v30, 1.0
    %v32 = vmul.f32 %v29, %v31
    %v33 = vlaneseq
    %vm34 = vcmp.ge.s32.totalorder %v33, 0
    %vm35 = vcmp.lt.s32.totalorder %v33, 512
    %vm36 = vmand %vm34, %vm35
    %37 = vst.msk [vmem:[#allocation5] sm:$0xf] %vm36, %v32
    // Predicated region
    $region10: #{tpu_custom_call.1} parent=1 // pred_check
      _
    $region11: #{tpu_custom_call.1} parent=1 // pred_check_branch
      %39 = sbr.rel (0) target = $region13
    $region12: #{tpu_custom_call.1} parent=1 // pred_region
      %41 = vsyncadd [#allocation4], 0
      %s43 = sshll.u32 [#allocation5], 4
      %s44 = int_to_ptr.vmem [resolvable:$true] %s43
      %s45 = sshll.u32 %s1, 4
      %s46 = int_to_ptr.hbm [resolvable:$true] %s45
      %48 = dma.vmem_to_hbm [thread:$0]  %s44, 64, %s46, [#allocation4]
    $region13: #{tpu_custom_call.1} parent=1 // pred_fallthru
      _
    // Predicated region
    $region14: #{tpu_custom_call.1} parent=1 // pred_check
      _
    $region15: #{tpu_custom_call.1} parent=1 // pred_check_branch
      %50 = sbr.rel (0) target = $region17
    $region16: #{tpu_custom_call.1} parent=1 // pred_region
      %52 = dma.done [#allocation4], 64
    $region17: #{tpu_custom_call.1} parent=1 // pred_fallthru
      _
    %53 = vsyncpa [#allocation3], 1
    %54 = vsyncpa [#allocation4], 1

</llo_original>
